<compile_context>
chip_gen: v7x
topology: tpu7x:2x2x1
jax: 0.10.0
libtpu: 0.0.40
codegen_flags: <defaults>
</compile_context>

<pallas_src>
import functools

import jax
import jax.numpy as jnp
from jax import lax
from jax.experimental import pallas as pl
from jax.experimental.pallas import tpu as pltpu


def _round_up(x, m):
    return ((x + m - 1) // m) * m


def _cdiv(a, b):
    return -(-a // b)


def _agce_kernel(pred_ref, labels_ref, out_ref, acc_ref, *, a, q, n_valid):
    """One (C, tile_n) tile: classes on sublanes, batch on lanes."""
    core = pl.program_id(0)              # per-core partial-sum axis (size 1 on v5e/v6e)
    i = pl.program_id(1)                 # accumulation axis
    tiles_per_core = pl.num_programs(1)

    @pl.when(i == 0)
    def _():
        acc_ref[...] = jnp.zeros_like(acc_ref)

    c_classes, tile_n = pred_ref.shape
    x = pred_ref[...].astype(jnp.float32)               # (C, TN)
    labels = labels_ref[...]                            # (1, TN) int32

    # Numerically-stable softmax pieces along the class (sublane) axis; the softmax
    # matrix itself is never materialized.
    m = jnp.max(x, axis=0, keepdims=True)               # (1, TN)   XLU
    e = jnp.exp(x - m)                                   # (C, TN)   EUP
    denom = jnp.sum(e, axis=0, keepdims=True)            # (1, TN)   XLU sublane reduce
    cls = lax.broadcasted_iota(jnp.int32, (c_classes, tile_n), 0)
    num = jnp.sum(jnp.where(cls == labels, e, 0.0), axis=0, keepdims=True)
    dot = num * pl.reciprocal(denom, approx=False)       # softmax prob of target class

    z = jnp.float32(a) + dot
    if float(q) == int(q) and int(q) >= 1:                # e.g. q=2 -> z*z, no exp/log pair
        zq = lax.integer_pow(z, int(q))
    else:
        zq = jnp.power(z, jnp.float32(q))
    loss = (jnp.float32((a + 1.0) ** q) - zq) * jnp.float32(1.0 / q)   # (1, TN)

    # Ragged-tail handling: only tiles whose column range reaches past n_valid pay for
    # the iota/compare/select; fully-valid tiles take the cheap accumulate branch.
    g = core * tiles_per_core + i                        # global tile index (scalar ALU)
    needs_mask = (g + 1) * tile_n > n_valid

    @pl.when(needs_mask)
    def _():
        col = g * tile_n + lax.broadcasted_iota(jnp.int32, (1, tile_n), 1)
        # select-style masking (NOT multiplicative) so garbage/NaN in OOB columns never
        # propagates into the accumulator.
        acc_ref[...] += jnp.where(col < n_valid, loss, jnp.float32(0.0))

    @pl.when(jnp.logical_not(needs_mask))
    def _():
        acc_ref[...] += loss                             # lane-wise partial sums (VPU only)

    @pl.when(i == tiles_per_core - 1)
    def _():
        # single cross-lane reduction per core, only at the end
        out_ref[...] = jnp.sum(acc_ref[...], axis=1, keepdims=True).reshape(1, 1, 1)


def agce_loss_pallas(pred, labels, *, a=1.0, q=2.0, scale=1.0, tile_n=None,
                     pred_is_transposed=False):
    """AGCE loss forward.

    pred:   (N, C) float logits, or (C, N) when pred_is_transposed=True (preferred:
            consumed directly, no wrapper transpose copy / extra HBM pass).
    labels: (N,) integer class ids (hard labels).
    """
    if pred_is_transposed:
        C, N = pred.shape
        pred_cn = pred
    else:
        # Compatibility path: one extra HBM transpose pass. Prefer emitting logits as
        # (C, N) upstream and calling with pred_is_transposed=True.
        N, C = pred.shape
        pred_cn = pred.T

    labels_row = labels.astype(jnp.int32).reshape(1, N)   # metadata-only reshape
    itemsize = jnp.dtype(pred_cn.dtype).itemsize           # f32 or bf16 logits supported

    # ---- generation-aware sizing ------------------------------------------------------
    try:
        vmem_bytes = int(pltpu.get_tpu_info().vmem_capacity_bytes)
    except Exception:
        vmem_bytes = 64 * 1024 * 1024                      # conservative fallback (v7x/TC)

    try:
        device_kind = jax.devices()[0].device_kind.lower()
    except Exception:
        device_kind = ""
    core_parallel = getattr(pltpu, "CORE_PARALLEL", None)
    arbitrary = getattr(pltpu, "ARBITRARY", "arbitrary")
    # Only v7x-class chips expose a second TensorCore per device; on v5e/v6e a size-2
    # leading axis would just be a serial loop with extra padding granularity.
    num_partials = 2 if ("v7" in device_kind and core_parallel is not None) else 1

    # VMEM accounting WITH sublane padding:
    #   pred block (C, tile_n): C rounded up to the dtype sublane granule (f32: 8, bf16: 16)
    #   labels block (1, tile_n) int32 -> 8 sublanes; acc (1, tile_n) f32 -> 8 sublanes.
    sub_granule = 8 * max(1, 4 // itemsize)
    padded_c = _round_up(C, sub_granule)
    pred_col_bytes = padded_c * itemsize
    lab_col_bytes = 8 * 4
    acc_col_bytes = 8 * 4
    per_col = 2 * (pred_col_bytes + lab_col_bytes) + acc_col_bytes   # 2x = double buffer

    if tile_n is None:
        budget = vmem_bytes // 3                           # ~1/3 of per-core VMEM
        cap_vmem = budget // per_col
        cap_batch = _round_up(max(_cdiv(N, num_partials), 1), 128)
        tile_n = max(128, (min(cap_vmem, cap_batch) // 128) * 128)
    else:
        assert tile_n % 128 == 0, "tile_n must be a multiple of 128 (lane width)"

    total_tiles = _cdiv(N, tile_n)
    num_partials = min(num_partials, total_tiles)
    tiles_per_core = _cdiv(total_tiles, num_partials)

    # Block-index map; clamp only when the multi-core split overshoots the real tile count
    # (the single-core path keeps a plain affine map). Over-shot tiles are fully masked
    # in-kernel, so re-reading the last real tile is harmless.
    if num_partials * tiles_per_core == total_tiles:
        def col_map(c, i):
            return (0, c * tiles_per_core + i)
    else:
        last = total_tiles - 1
        def col_map(c, i):
            return (0, jnp.minimum(c * tiles_per_core + i, last))

    needed = per_col * tile_n + (1 << 20)
    vmem_limit = int(min(max(needed + (4 << 20), 16 << 20), int(vmem_bytes * 0.9)))
    vmem_limit = max(vmem_limit, needed)

    # NOTE: a, q, n_valid are compile-time constants; the grid already depends on N so a
    # per-batch-size recompile is unavoidable either way.
    kernel = functools.partial(_agce_kernel, a=float(a), q=float(q), n_valid=int(N))

    cost = pl.CostEstimate(
        flops=int(10 * N * C),
        transcendentals=int(N * C + N),
        bytes_accessed=int(N * C * itemsize + N * 4 + num_partials * 4),
    )

    dims = (core_parallel if num_partials > 1 else arbitrary, arbitrary)

    partials = pl.pallas_call(
        kernel,
        out_shape=jax.ShapeDtypeStruct((num_partials, 1, 1), jnp.float32),
        grid_spec=pltpu.PrefetchScalarGridSpec(
            num_scalar_prefetch=0,
            grid=(num_partials, tiles_per_core),
            in_specs=[
                pl.BlockSpec((C, tile_n), col_map),
                pl.BlockSpec((1, tile_n), col_map),
            ],
            out_specs=pl.BlockSpec((1, 1, 1), lambda c, i: (c, 0, 0)),
            scratch_shapes=[pltpu.VMEM((1, tile_n), jnp.float32)],
        ),
        compiler_params=pltpu.CompilerParams(
            dimension_semantics=dims,
            vmem_limit_bytes=vmem_limit,
        ),
        cost_estimate=cost,
    )(pred_cn, labels_row)

    return jnp.sum(partials) * jnp.float32(scale / N)


def agce_loss_ref(pred, labels_onehot, *, a=1.0, q=2.0, scale=1.0):
    """Pure-JAX reference matching the PyTorch AGCELoss.forward semantics."""
    p = jax.nn.softmax(pred.astype(jnp.float32), axis=1)
    dot = jnp.sum(labels_onehot.astype(jnp.float32) * p, axis=1)
    loss = ((a + 1.0) ** q - jnp.power(a + dot, q)) / q
    return loss.mean() * scale


if __name__ == "__main__":
    num_classes = 10
    batch = 8
    a, q, scale = 1.0, 2.0, 1.0

    key = jax.random.PRNGKey(0)
    k_pred, k_lab = jax.random.split(key)
    pred_nc = jax.random.normal(k_pred, (batch, num_classes), dtype=jnp.float32)
    label_ids = jax.random.randint(k_lab, (batch,), 0, num_classes)

    # Preferred producer layout: logits already (C, N) -> no wrapper transpose copy.
    pred_cn = pred_nc.T
    out_fast = agce_loss_pallas(pred_cn, label_ids, a=a, q=q, scale=scale,
                                pred_is_transposed=True)
    out_fast = jax.block_until_ready(out_fast)

    # Drop-in (N, C) compatibility path (does one transpose in the wrapper).
    out_compat = agce_loss_pallas(pred_nc, label_ids, a=a, q=q, scale=scale)
    out_compat = jax.block_until_ready(out_compat)

    labels_onehot = jax.nn.one_hot(label_ids, num_classes, dtype=jnp.float32)
    ref = agce_loss_ref(pred_nc, labels_onehot, a=a, q=q, scale=scale)

    assert jnp.allclose(out_fast, ref, rtol=1e-5, atol=1e-5), (out_fast, ref)
    assert jnp.allclose(out_compat, ref, rtol=1e-5, atol=1e-5), (out_compat, ref)

    print("KERNEL_OK")
</pallas_src>

<mosaic_0001>
module attributes {stable_mosaic.version = 11 : i64} {
  func.func @_agce_kernel(%arg0: i32, %arg1: i32, %arg2: memref<10x128xf32, #tpu.memory_space<vmem>>, %arg3: memref<1x128xi32, #tpu.memory_space<vmem>>, %arg4: memref<1x1x1xf32, #tpu.memory_space<vmem>>, %arg5: memref<1x128xf32, #tpu.memory_space<vmem>>) attributes {dimension_semantics = [#tpu.dimension_semantics<arbitrary>, #tpu.dimension_semantics<arbitrary>], iteration_bounds = array<i64: 1, 1>, scalar_prefetch = 0 : i64, scratch_operands = 1 : i64, tpu.core_type = #tpu.core_type<tc>, window_params = [{transform_indices = @transform_0, window_bounds = array<i64: 10, 128>}, {transform_indices = @transform_1, window_bounds = array<i64: 1, 128>}, {transform_indices = @transform_2, window_bounds = array<i64: 1, 1, 1>}]} {
    %c0_i32 = arith.constant 0 : i32
    %0 = arith.cmpi eq, %arg1, %c0_i32 : i32
    %1 = arith.extui %0 : i1 to i32
    %c0_i32_0 = arith.constant 0 : i32
    %2 = arith.cmpi ne, %1, %c0_i32_0 : i32
    scf.if %2 {
      %cst_15 = arith.constant 0.000000e+00 : f32
      %41 = vector.broadcast %cst_15 : f32 to vector<1x128xf32>
      %c0_16 = arith.constant 0 : index
      %c0_17 = arith.constant 0 : index
      %42 = vector.load %arg5[%c0_16, %c0_17] : memref<1x128xf32, #tpu.memory_space<vmem>>, vector<1x128xf32>
      tpu.vector_store %arg5[%c0_16, %c0_17], %41 {strides = array<i32>} : memref<1x128xf32, #tpu.memory_space<vmem>>, vector<1x128xf32>,
    } else {
    }
    %c0 = arith.constant 0 : index
    %c0_1 = arith.constant 0 : index
    %3 = vector.load %arg2[%c0, %c0_1] : memref<10x128xf32, #tpu.memory_space<vmem>>, vector<10x128xf32>
    %c0_2 = arith.constant 0 : index
    %c0_3 = arith.constant 0 : index
    %4 = vector.load %arg3[%c0_2, %c0_3] : memref<1x128xi32, #tpu.memory_space<vmem>>, vector<1x128xi32>
    %cst = arith.constant dense<0xFF800000> : vector<128xf32>
    %5 = vector.multi_reduction <maximumf>, %3, %cst [0] : vector<10x128xf32> to vector<128xf32>
    %6 = vector.shape_cast %5 : vector<128xf32> to vector<1x128xf32>
    %7 = vector.broadcast %6 : vector<1x128xf32> to vector<10x128xf32>
    %8 = arith.subf %3, %7 : vector<10x128xf32>
    %9 = math.exp %8 : vector<10x128xf32>
    %cst_4 = arith.constant dense<0.000000e+00> : vector<128xf32>
    %10 = vector.multi_reduction <add>, %9, %cst_4 [0] : vector<10x128xf32> to vector<128xf32>
    %11 = vector.shape_cast %10 : vector<128xf32> to vector<1x128xf32>
    %12 = tpu.iota {dimensions = array<i32: 0>} : vector<10x128xi32>
    %13 = vector.broadcast %4 : vector<1x128xi32> to vector<10x128xi32>
    %14 = arith.cmpi eq, %12, %13 : vector<10x128xi32>
    %cst_5 = arith.constant 0.000000e+00 : f32
    %15 = vector.broadcast %cst_5 : f32 to vector<10x128xf32>
    %16 = arith.select %14, %9, %15 : vector<10x128xi1>, vector<10x128xf32>
    %cst_6 = arith.constant dense<0.000000e+00> : vector<128xf32>
    %17 = vector.multi_reduction <add>, %16, %cst_6 [0] : vector<10x128xf32> to vector<128xf32>
    %18 = vector.shape_cast %17 : vector<128xf32> to vector<1x128xf32>
    %19 = tpu.reciprocal %11 : vector<1x128xf32> -> vector<1x128xf32>
    %20 = arith.mulf %18, %19 : vector<1x128xf32>
    %cst_7 = arith.constant 1.000000e+00 : f32
    %21 = vector.broadcast %cst_7 : f32 to vector<1x128xf32>
    %22 = arith.addf %21, %20 : vector<1x128xf32>
    %23 = arith.mulf %22, %22 : vector<1x128xf32>
    %cst_8 = arith.constant 4.000000e+00 : f32
    %24 = vector.broadcast %cst_8 : f32 to vector<1x128xf32>
    %25 = arith.subf %24, %23 : vector<1x128xf32>
    %cst_9 = arith.constant 5.000000e-01 : f32
    %26 = vector.broadcast %cst_9 : f32 to vector<1x128xf32>
    %27 = arith.mulf %25, %26 : vector<1x128xf32>
    %c1_i32 = arith.constant 1 : i32
    %28 = arith.muli %arg0, %c1_i32 : i32
    %29 = arith.addi %28, %arg1 : i32
    %c1_i32_10 = arith.constant 1 : i32
    %30 = arith.addi %29, %c1_i32_10 : i32
    %c128_i32 = arith.constant 128 : i32
    %31 = arith.muli %30, %c128_i32 : i32
    %c8_i32 = arith.constant 8 : i32
    %32 = arith.cmpi sgt, %31, %c8_i32 : i32
    %33 = arith.extui %32 : i1 to i32
    %c0_i32_11 = arith.constant 0 : i32
    %34 = arith.cmpi ne, %33, %c0_i32_11 : i32
    scf.if %34 {
      %c128_i32_15 = arith.constant 128 : i32
      %41 = arith.muli %29, %c128_i32_15 : i32
      %42 = tpu.iota {dimensions = array<i32: 1>} : vector<1x128xi32>
      %43 = vector.broadcast %41 : i32 to vector<1x128xi32>
      %44 = arith.addi %43, %42 : vector<1x128xi32>
      %c0_16 = arith.constant 0 : index
      %c0_17 = arith.constant 0 : index
      %45 = vector.load %arg5[%c0_16, %c0_17] : memref<1x128xf32, #tpu.memory_space<vmem>>, vector<1x128xf32>
      %c8_i32_18 = arith.constant 8 : i32
      %46 = vector.broadcast %c8_i32_18 : i32 to vector<1x128xi32>
      %47 = arith.cmpi slt, %44, %46 : vector<1x128xi32>
      %cst_19 = arith.constant 0.000000e+00 : f32
      %48 = vector.broadcast %cst_19 : f32 to vector<1x128xf32>
      %49 = arith.select %47, %27, %48 : vector<1x128xi1>, vector<1x128xf32>
      %50 = arith.addf %45, %49 : vector<1x128xf32>
      %c0_20 = arith.constant 0 : index
      %c0_21 = arith.constant 0 : index
      %51 = vector.load %arg5[%c0_20, %c0_21] : memref<1x128xf32, #tpu.memory_space<vmem>>, vector<1x128xf32>
      tpu.vector_store %arg5[%c0_20, %c0_21], %50 {strides = array<i32>} : memref<1x128xf32, #tpu.memory_space<vmem>>, vector<1x128xf32>,
    } else {
    }
    %true = arith.constant true
    %35 = arith.xori %32, %true : i1
    %36 = arith.extui %35 : i1 to i32
    %c0_i32_12 = arith.constant 0 : i32
    %37 = arith.cmpi ne, %36, %c0_i32_12 : i32
    scf.if %37 {
      %c0_15 = arith.constant 0 : index
      %c0_16 = arith.constant 0 : index
      %41 = vector.load %arg5[%c0_15, %c0_16] : memref<1x128xf32, #tpu.memory_space<vmem>>, vector<1x128xf32>
      %42 = arith.addf %41, %27 : vector<1x128xf32>
      %c0_17 = arith.constant 0 : index
      %c0_18 = arith.constant 0 : index
      %43 = vector.load %arg5[%c0_17, %c0_18] : memref<1x128xf32, #tpu.memory_space<vmem>>, vector<1x128xf32>
      tpu.vector_store %arg5[%c0_17, %c0_18], %42 {strides = array<i32>} : memref<1x128xf32, #tpu.memory_space<vmem>>, vector<1x128xf32>,
    } else {
    }
    %c0_i32_13 = arith.constant 0 : i32
    %38 = arith.cmpi eq, %arg1, %c0_i32_13 : i32
    %39 = arith.extui %38 : i1 to i32
    %c0_i32_14 = arith.constant 0 : i32
    %40 = arith.cmpi ne, %39, %c0_i32_14 : i32
    scf.if %40 {
      %c0_15 = arith.constant 0 : index
      %c0_16 = arith.constant 0 : index
      %41 = vector.load %arg5[%c0_15, %c0_16] : memref<1x128xf32, #tpu.memory_space<vmem>>, vector<1x128xf32>
      %cst_17 = arith.constant dense<0.000000e+00> : vector<1xf32>
      %42 = vector.multi_reduction <add>, %41, %cst_17 [1] : vector<1x128xf32> to vector<1xf32>
      %43 = vector.shape_cast %42 : vector<1xf32> to vector<1x1xf32>
      %44 = vector.shape_cast %43 : vector<1x1xf32> to vector<1x1x1xf32>
      %c0_18 = arith.constant 0 : index
      %c0_19 = arith.constant 0 : index
      %c0_20 = arith.constant 0 : index
      %45 = vector.load %arg4[%c0_18, %c0_19, %c0_20] : memref<1x1x1xf32, #tpu.memory_space<vmem>>, vector<1x1x1xf32>
      tpu.vector_store %arg4[%c0_18, %c0_19, %c0_20], %44 {strides = array<i32>} : memref<1x1x1xf32, #tpu.memory_space<vmem>>, vector<1x1x1xf32>,
    } else {
    }
    return
  }
  func.func @transform_0(%arg0: i32, %arg1: i32) -> (i32, i32) {
    %c1_i32 = arith.constant 1 : i32
    %0 = arith.muli %arg0, %c1_i32 : i32
    %1 = arith.addi %0, %arg1 : i32
    %c0_i32 = arith.constant 0 : i32
    %c0_i32_0 = arith.constant 0 : i32
    return %c0_i32, %1 : i32, i32
  }
  func.func @transform_1(%arg0: i32, %arg1: i32) -> (i32, i32) {
    %c1_i32 = arith.constant 1 : i32
    %0 = arith.muli %arg0, %c1_i32 : i32
    %1 = arith.addi %0, %arg1 : i32
    %c0_i32 = arith.constant 0 : i32
    %c0_i32_0 = arith.constant 0 : i32
    return %c0_i32, %1 : i32, i32
  }
  func.func @transform_2(%arg0: i32, %arg1: i32) -> (i32, i32, i32) {
    %c0_i32 = arith.constant 0 : i32
    %c0_i32_0 = arith.constant 0 : i32
    %c0_i32_1 = arith.constant 0 : i32
    return %arg0, %c0_i32, %c0_i32_0 : i32, i32, i32
  }
}

</mosaic_0001>

<llo_original>
// kernel: tpu_custom_call.1
$region0: #{tpu_custom_call.1}
  #allocation0 [shape = 'u32[]', space=smem, size = 0x4, offset = 0x4, fixed_abs, tag = 'smem constant byte address 0x4 - core index']
  #allocation1 [shape = 'u32[144,128]{1,0:T(1,128)}', space=vmem, size = 0x12000, scoped, tag = 'internal scratch']
  #allocation2 [shape = 'f32[1,128]{1,0:T(1,128)}', space=vmem, size = 0x200, scoped, tag = 'scratch operand']
  %s0 = inlined_call_operand.vmem [shape: f32[10,8], index: 0, kind: input, shape index: {}]
  %s1 = inlined_call_operand.vmem [shape: s32[1,8], index: 1, kind: input, shape index: {}]
  %s2 = inlined_call_operand.hbm [shape: f32[1,1,1], index: 2, kind: output, shape index: {}]
  %s3 = sld [smem:[#allocation0]]
  $region34: #{tpu_custom_call.1} parent=0
    _
  %s5 = ssub.s32 1, %s3
  %s6 = scalar_select 0, %s5, %s3
  $region1: #{tpu_custom_call.1} parent=0
    #allocation3 [shape = 'u8[512]{0}', space=vmem, size = 0x400, scoped, tag = 'output window, operand 0, single buffered']
    #allocation4 [shape = 's32[1]{0}', space=sflag, size = 0x4, scoped, tag = 'scoped memory for tpu_custom_call.1']
    %7 = vsyncpa [#allocation4], 0
    // Predicated region
    $region2: #{tpu_custom_call.1} parent=1 // pred_check
      _
    $region3: #{tpu_custom_call.1} parent=1 // pred_check_branch
      %9 = sbr.rel (0) target = $region5
    $region4: #{tpu_custom_call.1} parent=1 // pred_region
      %s10 = sadd.s32 0, 0
      %p11 = scmp.lt.s32.totalorder %s10, 0
      %s12 = scalar_select %p11, %s10, 0
      %s13 = smul.addr %s12, 8
      %s14 = scalar_lea.vmem %s0, %s13
      %s15 = sadd.s32 0, 0
    $region5: #{tpu_custom_call.1} parent=1 // pred_fallthru
      _
    // Predicated region
    $region6: #{tpu_custom_call.1} parent=1 // pred_check
      _
    $region7: #{tpu_custom_call.1} parent=1 // pred_check_branch
      %17 = sbr.rel (0) target = $region9
    $region8: #{tpu_custom_call.1} parent=1 // pred_region
      %s18 = sadd.s32 0, 0
      %p19 = scmp.lt.s32.totalorder %s18, 0
      %s20 = scalar_select %p19, %s18, 0
      %s21 = scalar_lea.vmem %s1, %s20
      %s22 = sadd.s32 0, 0
    $region9: #{tpu_custom_call.1} parent=1 // pred_fallthru
      _
    %s23 = sadd.s32 0, 0
    %p24 = scmp.lt.s32.totalorder %s23, 0
    %s25 = scalar_select %p24, %s23, 0
    %s26 = smul.addr %s25, 8
    %s27 = scalar_lea.vmem %s0, %s26
    %s28 = sadd.s32 0, 0
    %p29 = scmp.lt.s32.totalorder %s28, 0
    %s30 = scalar_select %p29, %s28, 0
    %s31 = scalar_lea.vmem %s1, %s30
    %s32 = sadd.s32 0, 0
    %p33 = scmp.lt.s32.totalorder %s32, 0
    %s34 = scalar_select %p33, %s32, 0
    %s35 = smul.addr %s34, 8
    %s36 = scalar_lea.vmem %s0, %s35
    %s37 = sadd.s32 0, 0
    %s38 = sadd.s32 0, 0
    %p39 = scmp.lt.s32.totalorder %s38, 0
    %s40 = scalar_select %p39, %s38, 0
    %s41 = scalar_lea.vmem %s1, %s40
    %s42 = sadd.s32 0, 0
    %p43 = scmp.eq.s32.totalorder 0, 0
    // Predicated region
    $region10: #{tpu_custom_call.1} parent=1 // pred_check
      %p44 = pneg %p43
    $region11: #{tpu_custom_call.1} parent=1 // pred_check_branch
      %46 = sbr.rel (%p44) target = $region13
    $region12: #{tpu_custom_call.1} parent=1 // pred_region
      %47 = vst [vmem:[#allocation2] sm:$0x1] 0.0
    $region13: #{tpu_custom_call.1} parent=1 // pred_fallthru
      _
    %v48 = vld [vmem:[%s36] sm:$0xff]
    %v49 = vld [vmem:[%s36 + $0x8] sm:$0x3]
    %v50 = vld [vmem:[%s41] sm:$0x1]
    %vm51 = vcmask 1041408
    %v52 = vsel %vm51, %v49, -inf
    %v53 = vmax.f32 %v48, %v52
    %v54 = vrot.slane %v53, 4
    %v55 = vmax.f32 %v53, %v54
    %v56 = vrot.slane %v55, 2
    %v57 = vmax.f32 %v55, %v56
    %v58 = vrot.slane %v57, 1
    %v59 = vmax.f32 %v57, %v58
    %v60 = vsub.f32 %v48, %v59
    %v61 = vsub.f32 %v49, %v59
    %v62 = vmul.f32 %v60, 1.442695
    %v63 = vpow.pop %v62
    %v64 = vmul.f32 %v61, 1.442695
    %v65 = vpow.pop %v64
    %v66 = vsel %vm51, %v65, 0.0
    %v67 = vadd.f32 %v63, %v66
    %v68 = vrot.slane %v67, 4
    %v69 = vadd.f32 %v67, %v68
    %v70 = vrot.slane %v69, 2
    %v71 = vadd.f32 %v69, %v70
    %v72 = vrot.slane %v71, 1
    %v73 = vadd.f32 %v71, %v72
    %v74 = vlaneseq
    %v75 = vshrl.u32 %v74, 7
    %v76 = vadd.s32 %v75, 8
    %v77 = vlaneseq
    %v78 = vshrl.u32 %v77, 7
    %v79 = vsub.s32 0, %v78
    %v80 = vrot.slane %v50, %v79
    %vm81 = vcmp.eq.s32.totalorder %v75, %v80
    %vm82 = vcmp.eq.s32.totalorder %v76, %v80
    %v83 = vsel %vm81, %v63, 0.0
    %v84 = vsel %vm82, %v65, 0.0
    %v85 = vsel %vm51, %v84, 0.0
    %v86 = vadd.f32 %v83, %v85
    %v87 = vrot.slane %v86, 4
    %v88 = vadd.f32 %v86, %v87
    %v89 = vrot.slane %v88, 2
    %v90 = vadd.f32 %v88, %v89
    %v91 = vrot.slane %v90, 1
    %v92 = vadd.f32 %v90, %v91
    %v93 = vrcp.pop %v73
    %v94 = vmul.f32 %v92, %v93
    %v95 = vadd.f32 %v94, 1.0
    %v96 = vmul.f32 %v95, %v95
    %v97 = vsub.f32 4.0, %v96
    %v98 = vmul.f32 %v97, 0.5
    %s99 = sadd.s32 0, 0
    %s100 = sadd.s32 %s99, 1
    %s101 = smul.u32 %s100, 128
    %p102 = scmp.gt.s32.totalorder %s101, 8
    // Predicated region
    $region14: #{tpu_custom_call.1} parent=1 // pred_check
      %p103 = pneg %p102
    $region15: #{tpu_custom_call.1} parent=1 // pred_check_branch
      %105 = sbr.rel (%p103) target = $region17
    $region16: #{tpu_custom_call.1} parent=1 // pred_region
      %s106 = smul.u32 %s99, 128
      %v107 = vlaneseq
      %v108 = vand.u32 %v107, 127
      %v109 = vstv %s106
      %v110 = vadd.s32 %v109, %v108
      %v111 = vld [vmem:[#allocation2] sm:$0x1]
      %vm112 = vcmp.lt.s32.totalorder %v110, 8
      %v113 = vsel %vm112, %v98, 0.0
      %v114 = vadd.f32 %v111, %v113
      %115 = vst [vmem:[#allocation2] sm:$0x1] %v114
    $region17: #{tpu_custom_call.1} parent=1 // pred_fallthru
      _
    %p116 = scmp.le.s32.totalorder %s101, 8
    // Predicated region
    $region18: #{tpu_custom_call.1} parent=1 // pred_check
      %p117 = pneg %p116
    $region19: #{tpu_custom_call.1} parent=1 // pred_check_branch
      %119 = sbr.rel (%p117) target = $region21
    $region20: #{tpu_custom_call.1} parent=1 // pred_region
      %v120 = vld [vmem:[#allocation2] sm:$0x1]
      %v121 = vadd.f32 %v120, %v98
      %122 = vst [vmem:[#allocation2] sm:$0x1] %v121
    $region21: #{tpu_custom_call.1} parent=1 // pred_fallthru
      _
    // Predicated region
    $region22: #{tpu_custom_call.1} parent=1 // pred_check
      %p123 = pneg %p43
    $region23: #{tpu_custom_call.1} parent=1 // pred_check_branch
      %125 = sbr.rel (%p123) target = $region25
    $region24: #{tpu_custom_call.1} parent=1 // pred_region
      %v126 = vld [vmem:[#allocation2] sm:$0x1]
      %vm127 = vcmask 1040384
      %v128 = vsel %vm127, %v126, 0.0
      %129 = vadd.xlane.f32.xlu0 %v128
      %v130 = vpop.xlane.xlu0 %129
      %vm131 = vcmask 0
      %132 = vst.msk [vmem:[#allocation3] sm:$0x1] %vm131, %v130
    $region25: #{tpu_custom_call.1} parent=1 // pred_fallthru
      _
    // Predicated region
    $region26: #{tpu_custom_call.1} parent=1 // pred_check
      _
    $region27: #{tpu_custom_call.1} parent=1 // pred_check_branch
      %134 = sbr.rel (0) target = $region29
    $region28: #{tpu_custom_call.1} parent=1 // pred_region
      %s136 = ssub.s32 16, 16
      %137 = vsyncadd [#allocation4], %s136
      %s139 = sshll.u32 [#allocation3], 4
      %s140 = int_to_ptr.vmem [resolvable:$true] %s139
      %142 = dma.vmem_to_hbm [thread:$0]  %s140, 16, %s2, [#allocation4]
    $region29: #{tpu_custom_call.1} parent=1 // pred_fallthru
      _
    // Predicated region
    $region30: #{tpu_custom_call.1} parent=1 // pred_check
      _
    $region31: #{tpu_custom_call.1} parent=1 // pred_check_branch
      %144 = sbr.rel (0) target = $region33
    $region32: #{tpu_custom_call.1} parent=1 // pred_region
      %145 = dma.done [#allocation4], 16
    $region33: #{tpu_custom_call.1} parent=1 // pred_fallthru
      _
    %146 = vsyncpa [#allocation4], 1

</llo_original>
